<compile_context>
chip_gen: v7x
topology: tpu7x:2x2x1
jax: 0.10.0
libtpu: 0.0.40
codegen_flags: <defaults>
</compile_context>

<pallas_src>
import functools

import jax
import jax.numpy as jnp
from jax import lax
from jax.experimental import pallas as pl
from jax.experimental.pallas import tpu as pltpu


def _spatial_gather_kernel(m_ref, probs_ref, feats_ref, out_ref,
                           l_ref, acc_ref, *, n_total, block_n):
    # m_ref:     (K, 1)   f32  per-class max over the full spatial axis
    # probs_ref: (K, Nt)       current spatial tile of the class logits
    # feats_ref: (C, Nt)       current spatial tile of the features (native dtype)
    # out_ref:   (C, K)        final context (written on the last spatial tile)
    # l_ref:     (1, K)   f32  running softmax denominator
    # acc_ref:   (C, K)   f32  running unnormalized context
    j = pl.program_id(1)

    @pl.when(j == 0)
    def _init():
        l_ref[...] = jnp.zeros_like(l_ref)
        acc_ref[...] = jnp.zeros_like(acc_ref)

    p = probs_ref[...].astype(jnp.float32)          # (K, Nt) — softmax math in f32
    f = feats_ref[...]                              # (C, Nt) — keep native dtype

    if n_total % block_n != 0:
        # Mask the padded tail of the last spatial tile: exp(-inf) == 0 drops
        # those lanes from both the denominator and the matmul; feats lanes
        # are zeroed so stale VMEM contents can never leak in.
        base = j * block_n
        pos_p = lax.broadcasted_iota(jnp.int32, p.shape, 1) + base
        p = jnp.where(pos_p < n_total, p, -jnp.inf)
        pos_f = lax.broadcasted_iota(jnp.int32, f.shape, 1) + base
        f = jnp.where(pos_f < n_total, f, jnp.zeros_like(f))

    # Unnormalized softmax weights for this tile (exp runs on the EUP slot).
    e = jnp.exp(p - m_ref[...])                     # (K, Nt); masked lanes -> 0
    e_mx = e.astype(f.dtype)                        # MXU operand in feats dtype

    # Partial context^T: contract the spatial dim of (C, Nt) x (K, Nt) -> (C, K).
    acc_ref[...] += lax.dot_general(
        f, e_mx,
        dimension_numbers=(((1,), (1,)), ((), ())),
        preferred_element_type=jnp.float32,
    )
    # Softmax denominator, accumulated directly in the (1, K) lane layout.
    ones_row = jnp.ones((1, e_mx.shape[-1]), dtype=e_mx.dtype)
    l_ref[...] += lax.dot_general(
        ones_row, e_mx,
        dimension_numbers=(((1,), (1,)), ((), ())),
        preferred_element_type=jnp.float32,
    )

    @pl.when(j == pl.num_programs(1) - 1)
    def _finalize():
        inv_l = pl.reciprocal(l_ref[...])           # (1, K), exact reciprocal
        out_ref[...] = (acc_ref[...] * inv_l).astype(out_ref.dtype)


def _pick_block_n(n, c, k, feats_dtype, probs_dtype,
                  stream_budget_bytes=20 * 1024 * 1024):
    """Largest 128-multiple spatial tile whose double-buffered streams fit."""
    per_n = 2 * (c * jnp.dtype(feats_dtype).itemsize
                 + k * jnp.dtype(probs_dtype).itemsize)
    bn = stream_budget_bytes // max(per_n, 1)
    bn = max(128, (bn // 128) * 128)
    bn = min(bn, 8192)
    return int(n) if n <= bn else int(bn)


def spatial_gather(feats, probs, *, block_n=None):
    """feats: (B, C, H, W), probs: (B, K, H, W) -> (B, C, K, 1)."""
    B, C, H, W = feats.shape
    Bp, K, Hp, Wp = probs.shape
    assert B == Bp and (H, W) == (Hp, Wp), "feats and probs must share B, H, W"
    N = H * W

    feats_flat = feats.reshape(B, C, N)
    probs_flat = probs.reshape(B, K, N)

    if block_n is None:
        block_n = _pick_block_n(N, C, K, feats.dtype, probs.dtype)
    block_n = min(block_n, N)
    assert block_n == N or block_n % 128 == 0, "block_n must be full N or a multiple of 128"
    num_n = (N + block_n - 1) // block_n

    # Numerical-stability shift: per-class max over the (small) probs tensor.
    # This is a cheap XLA pre-pass (probs traffic is ~K/C of feats traffic);
    # the exp / sum / normalize all run inside the kernel.
    m = jnp.max(probs_flat.astype(jnp.float32), axis=-1, keepdims=True)  # (B, K, 1)

    kernel = functools.partial(_spatial_gather_kernel, n_total=N, block_n=block_n)

    out = pl.pallas_call(
        kernel,
        out_shape=jax.ShapeDtypeStruct((B, C, K), feats.dtype),
        grid_spec=pltpu.PrefetchScalarGridSpec(
            num_scalar_prefetch=0,
            grid=(B, num_n),                         # reduction (spatial) axis last
            in_specs=[
                pl.BlockSpec((None, K, 1), lambda b, j: (b, 0, 0)),
                pl.BlockSpec((None, K, block_n), lambda b, j: (b, 0, j)),
                # Dominant stream; could add pipeline_mode=pl.Buffered(3) if
                # DMA latency is exposed and VMEM allows.
                pl.BlockSpec((None, C, block_n), lambda b, j: (b, 0, j)),
            ],
            out_specs=pl.BlockSpec((None, C, K), lambda b, j: (b, 0, 0)),
            scratch_shapes=[
                pltpu.VMEM((1, K), jnp.float32),     # softmax denominator
                pltpu.VMEM((C, K), jnp.float32),     # context accumulator
            ],
        ),
        compiler_params=pltpu.CompilerParams(
            dimension_semantics=("parallel", "arbitrary"),
            vmem_limit_bytes=48 * 1024 * 1024,       # headroom under v7x 64 MiB
        ),
    )(m, probs_flat, feats_flat)

    # Already in (B, C, K) layout -> just add the trailing singleton dim
    # (matches .permute(0, 2, 1).unsqueeze(3)).
    return out[..., None]


def _reference(feats, probs):
    B, C = feats.shape[0], feats.shape[1]
    K = probs.shape[1]
    p = jax.nn.softmax(probs.reshape(B, K, -1).astype(jnp.float32), axis=2)
    f = feats.reshape(B, C, -1).astype(jnp.float32)
    ctx = jnp.einsum("bkn,bcn->bck", p, f)
    return ctx[..., None].astype(feats.dtype)


if __name__ == "__main__":
    key = jax.random.PRNGKey(0)

    # Case 1: small OCRNet-like shapes; spatial axis split into two 128-lane tiles.
    k1, k2 = jax.random.split(key)
    B, C, K, H, W = 2, 32, 4, 16, 16                 # N = 256
    feats = jax.random.normal(k1, (B, C, H, W), dtype=jnp.float32)
    probs = jax.random.normal(k2, (B, K, H, W), dtype=jnp.float32)
    out = spatial_gather(feats, probs, block_n=128)
    jax.block_until_ready(out)
    ref = _reference(feats, probs)
    assert out.shape == (B, C, K, 1), out.shape
    assert jnp.allclose(out, ref, atol=1e-4, rtol=1e-4)

    # Case 2: spatial size not a multiple of the tile -> exercises tail masking.
    k3, k4 = jax.random.split(k1)
    B2, C2, K2, H2, W2 = 2, 48, 5, 15, 15            # N = 225
    feats2 = jax.random.normal(k3, (B2, C2, H2, W2), dtype=jnp.float32)
    probs2 = jax.random.normal(k4, (B2, K2, H2, W2), dtype=jnp.float32)
    out2 = spatial_gather(feats2, probs2, block_n=128)
    jax.block_until_ready(out2)
    ref2 = _reference(feats2, probs2)
    assert out2.shape == (B2, C2, K2, 1), out2.shape
    assert jnp.allclose(out2, ref2, atol=1e-4, rtol=1e-4)

    print("KERNEL_OK")
</pallas_src>

<mosaic_0001>
module attributes {stable_mosaic.version = 11 : i64} {
  func.func @_spatial_gather_kernel(%arg0: i32, %arg1: i32, %arg2: memref<1x4x1xf32, #tpu.memory_space<vmem>>, %arg3: memref<1x4x128xf32, #tpu.memory_space<vmem>>, %arg4: memref<1x32x128xf32, #tpu.memory_space<vmem>>, %arg5: memref<1x32x4xf32, #tpu.memory_space<vmem>>, %arg6: memref<1x4xf32, #tpu.memory_space<vmem>>, %arg7: memref<32x4xf32, #tpu.memory_space<vmem>>) attributes {dimension_semantics = [#tpu.dimension_semantics<parallel>, #tpu.dimension_semantics<arbitrary>], iteration_bounds = array<i64: 2, 2>, scalar_prefetch = 0 : i64, scratch_operands = 2 : i64, tpu.core_type = #tpu.core_type<tc>, window_params = [{transform_indices = @transform_0, window_bounds = array<i64: 1, 4, 1>}, {transform_indices = @transform_1, window_bounds = array<i64: 1, 4, 128>}, {transform_indices = @transform_2, window_bounds = array<i64: 1, 32, 128>}, {transform_indices = @transform_3, window_bounds = array<i64: 1, 32, 4>}]} {
    %c0_i32 = arith.constant 0 : i32
    %0 = arith.cmpi eq, %arg1, %c0_i32 : i32
    %1 = arith.extui %0 : i1 to i32
    %c0_i32_0 = arith.constant 0 : i32
    %2 = arith.cmpi ne, %1, %c0_i32_0 : i32
    scf.if %2 {
      %cst_20 = arith.constant 0.000000e+00 : f32
      %24 = vector.broadcast %cst_20 : f32 to vector<1x4xf32>
      %c0_21 = arith.constant 0 : index
      %c0_22 = arith.constant 0 : index
      %25 = vector.load %arg6[%c0_21, %c0_22] : memref<1x4xf32, #tpu.memory_space<vmem>>, vector<1x4xf32>
      tpu.vector_store %arg6[%c0_21, %c0_22], %24 {strides = array<i32>} : memref<1x4xf32, #tpu.memory_space<vmem>>, vector<1x4xf32>,
      %cst_23 = arith.constant 0.000000e+00 : f32
      %26 = vector.broadcast %cst_23 : f32 to vector<32x4xf32>
      %c0_24 = arith.constant 0 : index
      %c0_25 = arith.constant 0 : index
      %27 = vector.load %arg7[%c0_24, %c0_25] : memref<32x4xf32, #tpu.memory_space<vmem>>, vector<32x4xf32>
      tpu.vector_store %arg7[%c0_24, %c0_25], %26 {strides = array<i32>} : memref<32x4xf32, #tpu.memory_space<vmem>>, vector<32x4xf32>,
    } else {
    }
    %c0 = arith.constant 0 : index
    %c0_1 = arith.constant 0 : index
    %c0_2 = arith.constant 0 : index
    %3 = vector.load %arg3[%c0, %c0_1, %c0_2] : memref<1x4x128xf32, #tpu.memory_space<vmem>>, vector<1x4x128xf32>
    %4 = vector.shape_cast %3 : vector<1x4x128xf32> to vector<4x128xf32>
    %c0_3 = arith.constant 0 : index
    %c0_4 = arith.constant 0 : index
    %c0_5 = arith.constant 0 : index
    %5 = vector.load %arg4[%c0_3, %c0_4, %c0_5] : memref<1x32x128xf32, #tpu.memory_space<vmem>>, vector<1x32x128xf32>
    %6 = vector.shape_cast %5 : vector<1x32x128xf32> to vector<32x128xf32>
    %c0_6 = arith.constant 0 : index
    %c0_7 = arith.constant 0 : index
    %c0_8 = arith.constant 0 : index
    %7 = vector.load %arg2[%c0_6, %c0_7, %c0_8] : memref<1x4x1xf32, #tpu.memory_space<vmem>>, vector<1x4x1xf32>
    %8 = vector.shape_cast %7 : vector<1x4x1xf32> to vector<4x1xf32>
    %9 = vector.broadcast %8 : vector<4x1xf32> to vector<4x128xf32>
    %10 = arith.subf %4, %9 : vector<4x128xf32>
    %11 = math.exp %10 : vector<4x128xf32>
    %c0_9 = arith.constant 0 : index
    %c0_10 = arith.constant 0 : index
    %12 = vector.load %arg7[%c0_9, %c0_10] : memref<32x4xf32, #tpu.memory_space<vmem>>, vector<32x4xf32>
    %cst = arith.constant dense<0.000000e+00> : vector<32x4xf32>
    %13 = tpu.matmul %6, %11, %cst {dimension_numbers = #tpu.dot_dimension_numbers<[1], [1], [0], [0], [0, 0, 1, 0], [], []>} : vector<32x128xf32>, vector<4x128xf32>, vector<32x4xf32> -> vector<32x4xf32>
    %14 = arith.addf %12, %13 : vector<32x4xf32>
    %c0_11 = arith.constant 0 : index
    %c0_12 = arith.constant 0 : index
    %15 = vector.load %arg7[%c0_11, %c0_12] : memref<32x4xf32, #tpu.memory_space<vmem>>, vector<32x4xf32>
    tpu.vector_store %arg7[%c0_11, %c0_12], %14 {strides = array<i32>} : memref<32x4xf32, #tpu.memory_space<vmem>>, vector<32x4xf32>,
    %cst_13 = arith.constant 1.000000e+00 : f32
    %16 = vector.broadcast %cst_13 : f32 to vector<1x128xf32>
    %c0_14 = arith.constant 0 : index
    %c0_15 = arith.constant 0 : index
    %17 = vector.load %arg6[%c0_14, %c0_15] : memref<1x4xf32, #tpu.memory_space<vmem>>, vector<1x4xf32>
    %cst_16 = arith.constant dense<0.000000e+00> : vector<1x4xf32>
    %18 = tpu.matmul %16, %11, %cst_16 {dimension_numbers = #tpu.dot_dimension_numbers<[1], [1], [0], [0], [0, 0, 1, 0], [], []>} : vector<1x128xf32>, vector<4x128xf32>, vector<1x4xf32> -> vector<1x4xf32>
    %19 = arith.addf %17, %18 : vector<1x4xf32>
    %c0_17 = arith.constant 0 : index
    %c0_18 = arith.constant 0 : index
    %20 = vector.load %arg6[%c0_17, %c0_18] : memref<1x4xf32, #tpu.memory_space<vmem>>, vector<1x4xf32>
    tpu.vector_store %arg6[%c0_17, %c0_18], %19 {strides = array<i32>} : memref<1x4xf32, #tpu.memory_space<vmem>>, vector<1x4xf32>,
    %c1_i32 = arith.constant 1 : i32
    %21 = arith.cmpi eq, %arg1, %c1_i32 : i32
    %22 = arith.extui %21 : i1 to i32
    %c0_i32_19 = arith.constant 0 : i32
    %23 = arith.cmpi ne, %22, %c0_i32_19 : i32
    scf.if %23 {
      %c0_20 = arith.constant 0 : index
      %c0_21 = arith.constant 0 : index
      %24 = vector.load %arg6[%c0_20, %c0_21] : memref<1x4xf32, #tpu.memory_space<vmem>>, vector<1x4xf32>
      %25 = tpu.reciprocal %24 : vector<1x4xf32> -> vector<1x4xf32>
      %c0_22 = arith.constant 0 : index
      %c0_23 = arith.constant 0 : index
      %26 = vector.load %arg7[%c0_22, %c0_23] : memref<32x4xf32, #tpu.memory_space<vmem>>, vector<32x4xf32>
      %27 = vector.broadcast %25 : vector<1x4xf32> to vector<32x4xf32>
      %28 = arith.mulf %26, %27 : vector<32x4xf32>
      %c0_24 = arith.constant 0 : index
      %c0_25 = arith.constant 0 : index
      %c0_26 = arith.constant 0 : index
      %29 = vector.load %arg5[%c0_24, %c0_25, %c0_26] : memref<1x32x4xf32, #tpu.memory_space<vmem>>, vector<1x32x4xf32>
      %30 = vector.shape_cast %29 : vector<1x32x4xf32> to vector<32x4xf32>
      %31 = vector.shape_cast %28 : vector<32x4xf32> to vector<1x32x4xf32>
      tpu.vector_store %arg5[%c0_24, %c0_25, %c0_26], %31 {strides = array<i32>} : memref<1x32x4xf32, #tpu.memory_space<vmem>>, vector<1x32x4xf32>,
    } else {
    }
    return
  }
  func.func @transform_0(%arg0: i32, %arg1: i32) -> (i32, i32, i32) {
    %c0_i32 = arith.constant 0 : i32
    %c0_i32_0 = arith.constant 0 : i32
    %c0_i32_1 = arith.constant 0 : i32
    return %arg0, %c0_i32, %c0_i32_0 : i32, i32, i32
  }
  func.func @transform_1(%arg0: i32, %arg1: i32) -> (i32, i32, i32) {
    %c0_i32 = arith.constant 0 : i32
    %c0_i32_0 = arith.constant 0 : i32
    return %arg0, %c0_i32, %arg1 : i32, i32, i32
  }
  func.func @transform_2(%arg0: i32, %arg1: i32) -> (i32, i32, i32) {
    %c0_i32 = arith.constant 0 : i32
    %c0_i32_0 = arith.constant 0 : i32
    return %arg0, %c0_i32, %arg1 : i32, i32, i32
  }
  func.func @transform_3(%arg0: i32, %arg1: i32) -> (i32, i32, i32) {
    %c0_i32 = arith.constant 0 : i32
    %c0_i32_0 = arith.constant 0 : i32
    %c0_i32_1 = arith.constant 0 : i32
    return %arg0, %c0_i32, %c0_i32_0 : i32, i32, i32
  }
}

</mosaic_0001>

<llo_original>
// kernel: tpu_custom_call.1
$region0: #{tpu_custom_call.1}
  #allocation0 [shape = 'u32[]', space=smem, size = 0x4, offset = 0x4, fixed_abs, tag = 'smem constant byte address 0x4 - core index']
  #allocation1 [shape = 'u32[144,128]{1,0:T(1,128)}', space=vmem, size = 0x12000, scoped, tag = 'internal scratch']
  #allocation2 [shape = 'f32[1,4]{1,0:T(1,128)}', space=vmem, size = 0x200, scoped, tag = 'scratch operand']
  #allocation3 [shape = 'f32[32,4]{1,0:T(8,128)}', space=vmem, size = 0x4000, scoped, tag = 'scratch operand']
  %s0 = inlined_call_operand.vmem [shape: f32[2,4,1], index: 0, kind: input, shape index: {}]
  %s1 = inlined_call_operand.hbm [shape: f32[2,4,256], index: 1, kind: input, shape index: {}]
  %s2 = inlined_call_operand.hbm [shape: f32[2,32,256], index: 2, kind: input, shape index: {}]
  %s3 = inlined_call_operand.vmem [shape: f32[2,32,4], index: 3, kind: output, shape index: {}]
  %s4 = sld [smem:[#allocation0]]
  $region61: #{tpu_custom_call.1} parent=0
    _
  %s6 = ssub.s32 1, %s4
  %s7 = scalar_select 0, %s6, %s4
  $region1: #{tpu_custom_call.1} parent=0
    #allocation4 [shape = 'u8[4096]{0}', space=vmem, size = 0x1000, scoped, tag = 'input window, operand 1']
    #allocation5 [shape = 's32[2]{0}', space=sflag, size = 0x8, scoped, tag = 'scoped memory for tpu_custom_call.1']
    #allocation6 [shape = 'u8[32768]{0}', space=vmem, size = 0x8000, scoped, tag = 'input window, operand 2']
    #allocation7 [shape = 's32[2]{0}', space=sflag, size = 0x8, scoped, tag = 'scoped memory for tpu_custom_call.1']
    %8 = vsyncpa [#allocation5], 0
    %s9 = scalar_lea.sflag [#allocation5], 1
    %10 = vsyncpa %s9, 0
    %11 = vsyncpa [#allocation7], 0
    %s12 = scalar_lea.sflag [#allocation7], 1
    %13 = vsyncpa %s12, 0
    loop: start=0, step=1, limit=6
    $region2: #{tpu_custom_call.1} parent=1 // loop_pre_header
      _
    $region3: #{tpu_custom_call.1} parent=1 // loop_header
      %s15 = sphi 0, %s19
      %p16 = scmp.ge.s32.totalorder %s15, 6
      %s22 = sphi 0, %s34
      %s23 = sphi 0, %s30
      %s24 = sphi 0, %s22
      %s25 = sphi 0, %s23
      %s26 = sphi 0, %s24
      %s27 = sphi 0, %s25
      %s37 = sphi 0, %s39
      %s40 = sphi 0, %s37
      %s41 = sphi 0, %s40
      %s57 = sphi 0, %s41
      %s65 = sphi 0, %s67
      %s68 = sphi 0, %s65
      %s69 = sphi 0, %s68
      %s85 = sphi 0, %s69
      %s93 = sphi 0, %s95
      %s96 = sphi 0, %s93
      %s97 = sphi 0, %s96
      %s113 = sphi 0, %s97
      %s119 = sphi 0, %s121
      %s122 = sphi 0, %s119
      %s123 = sphi 0, %s122
      %s139 = sphi 0, %s123
    $region4: #{tpu_custom_call.1} parent=1 // loop_header_branch
      %18 = sbr.rel (%p16) target = $region8
    $region5: #{tpu_custom_call.1} parent=1 // loop_body
      %s20 = ssub.s32 %s15, 1
      %s21 = ssub.s32 %s15, 2
      %s28 = sadd.s32 1, %s23
      %p29 = scmp.ge.s32.totalorder %s28, 2
      %s30 = scalar_select %p29, 0, %s28
      %s31 = sadd.s32 1, %s22
      %s32 = scalar_select %p29, %s31, %s22
      %p33 = scmp.ge.s32.totalorder %s32, 2
      %s34 = scalar_select %p33, 0, %s32
      %s35 = ssub.s32 %s22, %s34
      %p36 = scmp.eq.s32.totalorder %s35, 0
      %s38 = sadd.s32 %s37, 1
      %s39 = scalar_select %p36, %s37, %s38
      %p42 = pneg %p36
      %p43 = scmp.eq.s32.totalorder %s15, 3
      %p44 = por %p42, %p43
      %p45 = scmp.ne.s32.totalorder %s37, %s40
      %p46 = scmp.eq.s32.totalorder %s15, 0
      %p47 = por %p45, %p46
      %p48 = scmp.ne.s32.totalorder %s37, %s40
      %p49 = scmp.eq.s32.totalorder %s20, 3
      %p50 = por %p48, %p49
      %p51 = scmp.ne.s32.totalorder %s40, %s41
      %p52 = scmp.eq.s32.totalorder %s20, 0
      %p53 = por %p51, %p52
      %p54 = scmp.ne.s32.totalorder %s40, %s41
      %p55 = scmp.eq.s32.totalorder %s21, 3
      %p56 = por %p54, %p55
      %p58 = scmp.ne.s32.totalorder %s41, %s57
      %p59 = scmp.eq.s32.totalorder %s21, 0
      %p60 = por %p58, %p59
      %s61 = ssub.s32 %s22, %s34
      %s62 = ssub.s32 %s23, %s30
      %s63 = sor.u32 %s61, %s62
      %p64 = scmp.eq.s32.totalorder %s63, 0
      %s66 = sadd.s32 %s65, 1
      %s67 = scalar_select %p64, %s65, %s66
      %p70 = pneg %p64
      %p71 = scmp.eq.s32.totalorder %s15, 3
      %p72 = por %p70, %p71
      %p73 = scmp.ne.s32.totalorder %s65, %s68
      %p74 = scmp.eq.s32.totalorder %s15, 0
      %p75 = por %p73, %p74
      %p76 = scmp.ne.s32.totalorder %s65, %s68
      %p77 = scmp.eq.s32.totalorder %s20, 3
      %p78 = por %p76, %p77
      %p79 = scmp.ne.s32.totalorder %s68, %s69
      %p80 = scmp.eq.s32.totalorder %s20, 0
      %p81 = por %p79, %p80
      %p82 = scmp.ne.s32.totalorder %s68, %s69
      %p83 = scmp.eq.s32.totalorder %s21, 3
      %p84 = por %p82, %p83
      %p86 = scmp.ne.s32.totalorder %s69, %s85
      %p87 = scmp.eq.s32.totalorder %s21, 0
      %p88 = por %p86, %p87
      %s89 = ssub.s32 %s22, %s34
      %s90 = ssub.s32 %s23, %s30
      %s91 = sor.u32 %s89, %s90
      %p92 = scmp.eq.s32.totalorder %s91, 0
      %s94 = sadd.s32 %s93, 1
      %s95 = scalar_select %p92, %s93, %s94
      %p98 = pneg %p92
      %p99 = scmp.eq.s32.totalorder %s15, 3
      %p100 = por %p98, %p99
      %p101 = scmp.ne.s32.totalorder %s93, %s96
      %p102 = scmp.eq.s32.totalorder %s15, 0
      %p103 = por %p101, %p102
      %p104 = scmp.ne.s32.totalorder %s93, %s96
      %p105 = scmp.eq.s32.totalorder %s20, 3
      %p106 = por %p104, %p105
      %p107 = scmp.ne.s32.totalorder %s96, %s97
      %p108 = scmp.eq.s32.totalorder %s20, 0
      %p109 = por %p107, %p108
      %p110 = scmp.ne.s32.totalorder %s96, %s97
      %p111 = scmp.eq.s32.totalorder %s21, 3
      %p112 = por %p110, %p111
      %p114 = scmp.ne.s32.totalorder %s97, %s113
      %p115 = scmp.eq.s32.totalorder %s21, 0
      %p116 = por %p114, %p115
      %s117 = ssub.s32 %s22, %s34
      %p118 = scmp.eq.s32.totalorder %s117, 0
      %s120 = sadd.s32 %s119, 1
      %s121 = scalar_select %p118, %s119, %s120
      %p124 = pneg %p118
      %p125 = scmp.eq.s32.totalorder %s15, 3
      %p126 = por %p124, %p125
      %p127 = scmp.ne.s32.totalorder %s119, %s122
      %p128 = scmp.eq.s32.totalorder %s15, 0
      %p129 = por %p127, %p128
      %p130 = scmp.ne.s32.totalorder %s119, %s122
      %p131 = scmp.eq.s32.totalorder %s20, 3
      %p132 = por %p130, %p131
      %p133 = scmp.ne.s32.totalorder %s122, %s123
      %p134 = scmp.eq.s32.totalorder %s20, 0
      %p135 = por %p133, %p134
      %p136 = scmp.ne.s32.totalorder %s122, %s123
      %p137 = scmp.eq.s32.totalorder %s21, 3
      %p138 = por %p136, %p137
      %p140 = scmp.ne.s32.totalorder %s123, %s139
      %p141 = scmp.eq.s32.totalorder %s21, 0
      %p142 = por %p140, %p141
      %p143 = scmp.le.s32.totalorder 1, %s15
      %p144 = scmp.lt.s32.totalorder %s15, 5
      %p145 = pnand %p143, %p144
      %p146 = pneg %p145
      // Predicated region
      $region9: #{tpu_custom_call.1} parent=5 // pred_check
        _
      $region10: #{tpu_custom_call.1} parent=5 // pred_check_branch
        %148 = sbr.rel (%p145) target = $region12
      $region11: #{tpu_custom_call.1} parent=5 // pred_region
        %s149 = ssub.s32 %s15, 1
      $region12: #{tpu_custom_call.1} parent=5 // pred_fallthru
        _
      %p150 = scmp.lt.s32.totalorder %s15, 4
      // Predicated region
      $region13: #{tpu_custom_call.1} parent=5 // pred_check
        %p151 = pneg %p150
      $region14: #{tpu_custom_call.1} parent=5 // pred_check_branch
        %153 = sbr.rel (%p151) target = $region16
      $region15: #{tpu_custom_call.1} parent=5 // pred_region
        // Predicated region
        $region17: #{tpu_custom_call.1} parent=15 // pred_check
          %p154 = pneg %p47
        $region18: #{tpu_custom_call.1} parent=15 // pred_check_branch
          %156 = sbr.rel (%p154) target = $region20
        $region19: #{tpu_custom_call.1} parent=15 // pred_region
          %p157 = scmp.lt.s32.totalorder %s22, 1
          %s158 = scalar_select %p157, %s22, 1
          %s159 = smul.addr %s158, 4
          %s160 = scalar_lea.vmem %s0, %s159
        $region20: #{tpu_custom_call.1} parent=15 // pred_fallthru
          _
        // Predicated region
        $region21: #{tpu_custom_call.1} parent=15 // pred_check
          %p161 = pneg %p75
        $region22: #{tpu_custom_call.1} parent=15 // pred_check_branch
          %163 = sbr.rel (%p161) target = $region24
        $region23: #{tpu_custom_call.1} parent=15 // pred_region
          %s164 = sand.u32 %s65, 1
          %s165 = scalar_lea.sflag [#allocation5], %s164
          %s166 = sand.u32 %s65, 1
          %s167 = smul.addr %s166, 4
          %s168 = scalar_lea.vmem [#allocation4], %s167
          %s170 = ssub.s32 64, 64
          %171 = vsyncadd %s165, %s170
          %s172 = smul.addr %s22, 2
          %s173 = sadd.s32 %s23, %s172
          %s174 = smul.addr %s173, 64
          %s175 = scalar_lea.hbm %s1, %s174
          %s177 = sshll.u32 %s168, 4
          %s178 = int_to_ptr.vmem [resolvable:$true] %s177
          %180 = dma.hbm_to_vmem [thread:$0]  %s175, 64, %s178, %s165
        $region24: #{tpu_custom_call.1} parent=15 // pred_fallthru
          _
        // Predicated region
        $region25: #{tpu_custom_call.1} parent=15 // pred_check
          %p181 = pneg %p103
        $region26: #{tpu_custom_call.1} parent=15 // pred_check_branch
          %183 = sbr.rel (%p181) target = $region28
        $region27: #{tpu_custom_call.1} parent=15 // pred_region
          %s184 = sand.u32 %s93, 1
          %s185 = scalar_lea.sflag [#allocation7], %s184
          %s186 = sand.u32 %s93, 1
          %s187 = smul.addr %s186, 32
          %s188 = scalar_lea.vmem [#allocation6], %s187
          %s190 = ssub.s32 512, 512
          %191 = vsyncadd %s185, %s190
          %s192 = smul.addr %s22, 8
          %s193 = sadd.s32 %s23, %s192
          %s194 = smul.addr %s193, 128
          %s195 = scalar_lea.hbm %s2, %s194
          %s196 = sshll.u32 %s188, 4
          %s197 = int_to_ptr.vmem [resolvable:$true] %s196
          %202 = dma.hbm_to_vmem [thread:$0]  %s195, 512, %s197, %s185, 256, 128, 8
        $region28: #{tpu_custom_call.1} parent=15 // pred_fallthru
          _
      $region16: #{tpu_custom_call.1} parent=5 // pred_fallthru
        _
      %p203 = scmp.le.s32.totalorder 1, %s15
      %p204 = scmp.lt.s32.totalorder %s15, 5
      %p205 = pnand %p203, %p204
      %p206 = pneg %p205
      // Predicated region
      $region29: #{tpu_custom_call.1} parent=5 // pred_check
        _
      $region30: #{tpu_custom_call.1} parent=5 // pred_check_branch
        %208 = sbr.rel (%p205) target = $region32
      $region31: #{tpu_custom_call.1} parent=5 // pred_region
        %s209 = ssub.s32 %s15, 1
        %s210 = sand.u32 %s68, 1
        %s211 = scalar_lea.sflag [#allocation5], %s210
        %s212 = sand.u32 %s68, 1
        %s213 = smul.addr %s212, 4
        %s214 = scalar_lea.vmem [#allocation4], %s213
        // Predicated region
        $region33: #{tpu_custom_call.1} parent=31 // pred_check
          %p215 = pneg %p81
        $region34: #{tpu_custom_call.1} parent=31 // pred_check_branch
          %217 = sbr.rel (%p215) target = $region36
        $region35: #{tpu_custom_call.1} parent=31 // pred_region
          %218 = dma.done %s211, 64
        $region36: #{tpu_custom_call.1} parent=31 // pred_fallthru
          _
        %s219 = sand.u32 %s96, 1
        %s220 = scalar_lea.sflag [#allocation7], %s219
        %s221 = sand.u32 %s96, 1
        %s222 = smul.addr %s221, 32
        %s223 = scalar_lea.vmem [#allocation6], %s222
        // Predicated region
        $region37: #{tpu_custom_call.1} parent=31 // pred_check
          %p224 = pneg %p109
        $region38: #{tpu_custom_call.1} parent=31 // pred_check_branch
          %226 = sbr.rel (%p224) target = $region40
        $region39: #{tpu_custom_call.1} parent=31 // pred_region
          %227 = dma.done %s220, 512
        $region40: #{tpu_custom_call.1} parent=31 // pred_fallthru
          _
        %p228 = scmp.lt.s32.totalorder %s24, 1
        %s229 = scalar_select %p228, %s24, 1
        %s230 = smul.addr %s229, 4
        %s231 = scalar_lea.vmem %s0, %s230
        %p232 = pneg %p53
        %p233 = pneg %p50
        %s234 = sand.u32 %s68, 1
        %s235 = scalar_lea.sflag [#allocation5], %s234
        %s236 = sand.u32 %s68, 1
        %s237 = smul.addr %s236, 4
        %s238 = scalar_lea.vmem [#allocation4], %s237
        %p239 = pneg %p81
        %p240 = pneg %p78
        %s241 = sand.u32 %s96, 1
        %s242 = scalar_lea.sflag [#allocation7], %s241
        %s243 = sand.u32 %s96, 1
        %s244 = smul.addr %s243, 32
        %s245 = scalar_lea.vmem [#allocation6], %s244
        %p246 = pneg %p109
        %p247 = pneg %p106
        %p248 = pneg %p135
        %p249 = pneg %p132
        %p250 = scmp.lt.s32.totalorder %s24, 1
        %s251 = scalar_select %p250, %s24, 1
        %s252 = smul.addr %s251, 4
        %s253 = smul.addr %s252, 8
        %s254 = scalar_lea.vmem %s3, %s253
        %p255 = scmp.lt.s32.totalorder %s24, 1
        %s256 = scalar_select %p255, %s24, 1
        %s257 = smul.addr %s256, 4
        %s258 = scalar_lea.vmem %s0, %s257
        %p259 = scmp.lt.s32.totalorder %s24, 1
        %s260 = scalar_select %p259, %s24, 1
        %s261 = smul.addr %s260, 4
        %s262 = smul.addr %s261, 8
        %s263 = scalar_lea.vmem %s3, %s262
        %p264 = scmp.eq.s32.totalorder %s25, 0
        // Predicated region
        $region41: #{tpu_custom_call.1} parent=31 // pred_check
          %p265 = pneg %p264
        $region42: #{tpu_custom_call.1} parent=31 // pred_check_branch
          %267 = sbr.rel (%p265) target = $region44
        $region43: #{tpu_custom_call.1} parent=31 // pred_region
          %vm268 = vcmask 24576
          %269 = vst.msk [vmem:[#allocation2] sm:$0x1] %vm268, 0.0
          %vm270 = vcmask 31744
          %271 = vst.msk [vmem:[#allocation3] sm:$0xff] %vm270, 0.0
          %272 = vst.msk [vmem:[#allocation3 + $0x8] sm:$0xff] %vm270, 0.0
          %273 = vst.msk [vmem:[#allocation3 + $0x10] sm:$0xff] %vm270, 0.0
          %274 = vst.msk [vmem:[#allocation3 + $0x18] sm:$0xff] %vm270, 0.0
        $region44: #{tpu_custom_call.1} parent=31 // pred_fallthru
          _
        %v275 = vld [vmem:[%s214] sm:$0xf]
        %v276 = vld [vmem:[%s223] sm:$0xff]
        %v277 = vld [vmem:[%s223 + $0x8] sm:$0xff]
        %v278 = vld [vmem:[%s223 + $0x10] sm:$0xff]
        %v279 = vld [vmem:[%s223 + $0x18] sm:$0xff]
        %v280 = vld [vmem:[%s258] sm:$0xf]
        %282 = vset.pattern.permute.xlu0 0
        %283 = vperm.xlu0 %282, %v280
        %v284 = vpop.permute.xlu0 %283
        %v286 = vsub.f32 %v275, %v284
        %v287 = vmul.f32 %v286, 1.442695
        %v288 = vpow.pop %v287
        %v289 = vld [vmem:[#allocation3] sm:$0xff]
        %v290 = vld [vmem:[#allocation3 + $0x8] sm:$0xff]
        %v291 = vld [vmem:[#allocation3 + $0x10] sm:$0xff]
        %v292 = vld [vmem:[#allocation3 + $0x18] sm:$0xff]
        %293 = vmatprep.subr.mxu0 0.0
        %294 = vmatpush1.xpose.msra.mxu0 %v288
        %295 = vmatprep.subr.mxu0 0.0
        %296 = vmatpush1.xpose.msra.mxu0 0.0
        %297 = vmatprep.subr.mxu0 0.0
        %298 = vmatpush1.xpose.msra.mxu0 0.0
        %299 = vmatprep.subr.mxu0 0.0
        %300 = vmatpush1.xpose.msra.mxu0 0.0
        %301 = vmatprep.subr.mxu0 0.0
        %302 = vmatpush1.xpose.msra.mxu0 0.0
        %303 = vmatprep.subr.mxu0 0.0
        %304 = vmatpush1.xpose.msra.mxu0 0.0
        %305 = vmatprep.subr.mxu0 0.0
        %306 = vmatpush1.xpose.msra.mxu0 0.0
        %307 = vmatprep.subr.mxu0 0.0
        %308 = vmatpush1.xpose.msra.mxu0 0.0
        %309 = vmatprep.subr.mxu0 0.0
        %310 = vmatpush1.xpose.msra.mxu0 0.0
        %311 = vmatprep.subr.mxu0 0.0
        %312 = vmatpush1.xpose.msra.mxu0 0.0
        %313 = vmatprep.subr.mxu0 0.0
        %314 = vmatpush1.xpose.msra.mxu0 0.0
        %315 = vmatprep.subr.mxu0 0.0
        %316 = vmatpush1.xpose.msra.mxu0 0.0
        %317 = vmatprep.subr.mxu0 0.0
        %318 = vmatpush1.xpose.msra.mxu0 0.0
        %319 = vmatprep.subr.mxu0 0.0
        %320 = vmatpush1.xpose.msra.mxu0 0.0
        %321 = vmatprep.subr.mxu0 0.0
        %322 = vmatpush1.xpose.msra.mxu0 0.0
        %323 = vmatprep.subr.mxu0 0.0
        %324 = vmatpush1.xpose.msra.mxu0 0.0
        %325 = vmatprep.subr.mxu0 0.0
        %326 = vmatpush1.xpose.msra.mxu0 0.0
        %327 = vmatprep.subr.mxu0 0.0
        %328 = vmatpush1.xpose.msra.mxu0 0.0
        %329 = vmatprep.subr.mxu0 0.0
        %330 = vmatpush1.xpose.msra.mxu0 0.0
        %331 = vmatprep.subr.mxu0 0.0
        %332 = vmatpush1.xpose.msra.mxu0 0.0
        %333 = vmatprep.subr.mxu0 0.0
        %334 = vmatpush1.xpose.msra.mxu0 0.0
        %335 = vmatprep.subr.mxu0 0.0
        %336 = vmatpush1.xpose.msra.mxu0 0.0
        %337 = vmatprep.subr.mxu0 0.0
        %338 = vmatpush1.xpose.msra.mxu0 0.0
        %339 = vmatprep.subr.mxu0 0.0
        %340 = vmatpush1.xpose.msra.mxu0 0.0
        %341 = vmatprep.subr.mxu0 0.0
        %342 = vmatpush1.xpose.msra.mxu0 0.0
        %343 = vmatprep.subr.mxu0 0.0
        %344 = vmatpush1.xpose.msra.mxu0 0.0
        %345 = vmatprep.subr.mxu0 0.0
        %346 = vmatpush1.xpose.msra.mxu0 0.0
        %347 = vmatprep.subr.mxu0 0.0
        %348 = vmatpush1.xpose.msra.mxu0 0.0
        %349 = vmatprep.subr.mxu0 0.0
        %350 = vmatpush1.xpose.msra.mxu0 0.0
        %351 = vmatprep.subr.mxu0 0.0
        %352 = vmatpush1.xpose.msra.mxu0 0.0
        %353 = vmatprep.subr.mxu0 0.0
        %354 = vmatpush1.xpose.msra.mxu0 0.0
        %355 = vmatprep.subr.mxu0 0.0
        %356 = vmatpush1.xpose.msra.mxu0 0.0
        %357 = vmatprep.mubr.f32.mxu0 0.0
        %358 = vmatmul.mubr.f32.gmra.mrb[0].mxu0 %v276
        %v359 = vpop.f32.mrb[0].mxu0
        %v360 = vadd.f32 0.0, %v359
        %v361 = vpop.f32.mrb[0].mxu0
        %362 = vmatprep.mubr.f32.mxu0 0.0
        %363 = vmatmul.mubr.f32.gmra.mrb[0].mxu0 %v277
        %v364 = vpop.f32.mrb[0].mxu0
        %v365 = vadd.f32 0.0, %v364
        %v366 = vpop.f32.mrb[0].mxu0
        %367 = vmatprep.mubr.f32.mxu0 0.0
        %368 = vmatmul.mubr.f32.gmra.mrb[0].mxu0 %v278
        %v369 = vpop.f32.mrb[0].mxu0
        %v370 = vadd.f32 0.0, %v369
        %v371 = vpop.f32.mrb[0].mxu0
        %372 = vmatprep.mubr.f32.mxu0 0.0
        %373 = vmatmul.mubr.f32.gmra.mrb[0].mxu0 %v279
        %v374 = vpop.f32.mrb[0].mxu0
        %v375 = vadd.f32 0.0, %v374
        %v376 = vpop.f32.mrb[0].mxu0
        %377 = vdwg.mxu0
        %v378 = vadd.f32 %v289, %v360
        %v379 = vadd.f32 %v290, %v365
        %v380 = vadd.f32 %v291, %v370
        %v381 = vadd.f32 %v292, %v375
        %vm382 = vcmask 31744
        %383 = vst.msk [vmem:[#allocation3] sm:$0xff] %vm382, %v378
        %384 = vst.msk [vmem:[#allocation3 + $0x8] sm:$0xff] %vm382, %v379
        %385 = vst.msk [vmem:[#allocation3 + $0x10] sm:$0xff] %vm382, %v380
        %386 = vst.msk [vmem:[#allocation3 + $0x18] sm:$0xff] %vm382, %v381
        %v387 = vld [vmem:[#allocation2] sm:$0x1]
        %388 = vmatprep.subr.mxu0 0.0
        %389 = vmatpush1.xpose.msra.mxu0 %v288
        %390 = vmatprep.subr.mxu0 0.0
        %391 = vmatpush1.xpose.msra.mxu0 0.0
        %392 = vmatprep.subr.mxu0 0.0
        %393 = vmatpush1.xpose.msra.mxu0 0.0
        %394 = vmatprep.subr.mxu0 0.0
        %395 = vmatpush1.xpose.msra.mxu0 0.0
        %396 = vmatprep.subr.mxu0 0.0
        %397 = vmatpush1.xpose.msra.mxu0 0.0
        %398 = vmatprep.subr.mxu0 0.0
        %399 = vmatpush1.xpose.msra.mxu0 0.0
        %400 = vmatprep.subr.mxu0 0.0
        %401 = vmatpush1.xpose.msra.mxu0 0.0
        %402 = vmatprep.subr.mxu0 0.0
        %403 = vmatpush1.xpose.msra.mxu0 0.0
        %404 = vmatprep.subr.mxu0 0.0
        %405 = vmatpush1.xpose.msra.mxu0 0.0
        %406 = vmatprep.subr.mxu0 0.0
        %407 = vmatpush1.xpose.msra.mxu0 0.0
        %408 = vmatprep.subr.mxu0 0.0
        %409 = vmatpush1.xpose.msra.mxu0 0.0
        %410 = vmatprep.subr.mxu0 0.0
        %411 = vmatpush1.xpose.msra.mxu0 0.0
        %412 = vmatprep.subr.mxu0 0.0
        %413 = vmatpush1.xpose.msra.mxu0 0.0
        %414 = vmatprep.subr.mxu0 0.0
        %415 = vmatpush1.xpose.msra.mxu0 0.0
        %416 = vmatprep.subr.mxu0 0.0
        %417 = vmatpush1.xpose.msra.mxu0 0.0
        %418 = vmatprep.subr.mxu0 0.0
        %419 = vmatpush1.xpose.msra.mxu0 0.0
        %420 = vmatprep.subr.mxu0 0.0
        %421 = vmatpush1.xpose.msra.mxu0 0.0
        %422 = vmatprep.subr.mxu0 0.0
        %423 = vmatpush1.xpose.msra.mxu0 0.0
        %424 = vmatprep.subr.mxu0 0.0
        %425 = vmatpush1.xpose.msra.mxu0 0.0
        %426 = vmatprep.subr.mxu0 0.0
        %427 = vmatpush1.xpose.msra.mxu0 0.0
        %428 = vmatprep.subr.mxu0 0.0
        %429 = vmatpush1.xpose.msra.mxu0 0.0
        %430 = vmatprep.subr.mxu0 0.0
        %431 = vmatpush1.xpose.msra.mxu0 0.0
        %432 = vmatprep.subr.mxu0 0.0
        %433 = vmatpush1.xpose.msra.mxu0 0.0
        %434 = vmatprep.subr.mxu0 0.0
        %435 = vmatpush1.xpose.msra.mxu0 0.0
        %436 = vmatprep.subr.mxu0 0.0
        %437 = vmatpush1.xpose.msra.mxu0 0.0
        %438 = vmatprep.subr.mxu0 0.0
        %439 = vmatpush1.xpose.msra.mxu0 0.0
        %440 = vmatprep.subr.mxu0 0.0
        %441 = vmatpush1.xpose.msra.mxu0 0.0
        %442 = vmatprep.subr.mxu0 0.0
        %443 = vmatpush1.xpose.msra.mxu0 0.0
        %444 = vmatprep.subr.mxu0 0.0
        %445 = vmatpush1.xpose.msra.mxu0 0.0
        %446 = vmatprep.subr.mxu0 0.0
        %447 = vmatpush1.xpose.msra.mxu0 0.0
        %448 = vmatprep.subr.mxu0 0.0
        %449 = vmatpush1.xpose.msra.mxu0 0.0
        %450 = vmatprep.subr.mxu0 0.0
        %451 = vmatpush1.xpose.msra.mxu0 0.0
        %452 = vmatprep.mubr.f32.mxu0 0.0
        %453 = vmatmul.mubr.f32.gmra.mrb[0].mxu0 1.0
        %v454 = vpop.f32.mrb[0].mxu0
        %v455 = vadd.f32 0.0, %v454
        %v456 = vpop.f32.mrb[0].mxu0
        %457 = vdwg.mxu0
        %v458 = vadd.f32 %v387, %v455
        %vm459 = vcmask 24576
        %460 = vst.msk [vmem:[#allocation2] sm:$0x1] %vm459, %v458
        %p461 = scmp.eq.s32.totalorder %s25, 1
        // Predicated region
        $region45: #{tpu_custom_call.1} parent=31 // pred_check
          %p462 = pneg %p461
        $region46: #{tpu_custom_call.1} parent=31 // pred_check_branch
          %464 = sbr.rel (%p462) target = $region48
        $region47: #{tpu_custom_call.1} parent=31 // pred_region
          %v465 = vld [vmem:[#allocation2] sm:$0x1]
          %v466 = vrcp.pop %v465
          %v467 = vld [vmem:[#allocation3] sm:$0xff]
          %v468 = vld [vmem:[#allocation3 + $0x8] sm:$0xff]
          %v469 = vld [vmem:[#allocation3 + $0x10] sm:$0xff]
          %v470 = vld [vmem:[#allocation3 + $0x18] sm:$0xff]
          %v472 = vlaneseq
          %v473 = vshrl.u32 %v472, 7
          %v474 = vsub.s32 0, %v473
          %v475 = vrot.slane %v466, %v474
          %v477 = vmul.f32 %v467, %v475
          %v478 = vmul.f32 %v468, %v475
          %v479 = vmul.f32 %v469, %v475
          %v480 = vmul.f32 %v470, %v475
          %481 = vst.msk [vmem:[%s263] sm:$0xff] %vm382, %v477
          %482 = vst.msk [vmem:[%s263 + $0x8] sm:$0xff] %vm382, %v478
          %483 = vst.msk [vmem:[%s263 + $0x10] sm:$0xff] %vm382, %v479
          %484 = vst.msk [vmem:[%s263 + $0x18] sm:$0xff] %vm382, %v480
        $region48: #{tpu_custom_call.1} parent=31 // pred_fallthru
          _
        %p485 = scmp.lt.s32.totalorder %s24, 1
        %s486 = scalar_select %p485, %s24, 1
        %s487 = smul.addr %s486, 4
        %s488 = smul.addr %s487, 8
        %s489 = scalar_lea.vmem %s3, %s488
        // Predicated region
        $region49: #{tpu_custom_call.1} parent=31 // pred_check
          %p490 = pneg %p132
        $region50: #{tpu_custom_call.1} parent=31 // pred_check_branch
          %492 = sbr.rel (%p490) target = $region52
        $region51: #{tpu_custom_call.1} parent=31 // pred_region
          _
        $region52: #{tpu_custom_call.1} parent=31 // pred_fallthru
          _
      $region32: #{tpu_custom_call.1} parent=5 // pred_fallthru
        _
      %p493 = scmp.le.s32.totalorder 2, %s15
      // Predicated region
      $region53: #{tpu_custom_call.1} parent=5 // pred_check
        %p494 = pneg %p493
      $region54: #{tpu_custom_call.1} parent=5 // pred_check_branch
        %496 = sbr.rel (%p494) target = $region56
      $region55: #{tpu_custom_call.1} parent=5 // pred_region
        %s497 = ssub.s32 %s15, 2
        // Predicated region
        $region57: #{tpu_custom_call.1} parent=55 // pred_check
          %p498 = pneg %p138
        $region58: #{tpu_custom_call.1} parent=55 // pred_check_branch
          %500 = sbr.rel (%p498) target = $region60
        $region59: #{tpu_custom_call.1} parent=55 // pred_region
          %p501 = scmp.lt.s32.totalorder %s26, 1
          %s502 = scalar_select %p501, %s26, 1
          %s503 = smul.addr %s502, 4
          %s504 = smul.addr %s503, 8
          %s505 = scalar_lea.vmem %s3, %s504
        $region60: #{tpu_custom_call.1} parent=55 // pred_fallthru
          _
      $region56: #{tpu_custom_call.1} parent=5 // pred_fallthru
        _
    $region6: #{tpu_custom_call.1} parent=1 // loop_footer
      %s19 = sadd.s32 1, %s15
    $region7: #{tpu_custom_call.1} parent=1 // loop_footer_branch
      %14 = sbr.rel target = $region3
    $region8: #{tpu_custom_call.1} parent=1 // loop_exit
      _
    %506 = vsyncpa [#allocation5], 1
    %s507 = scalar_lea.sflag [#allocation5], 1
    %508 = vsyncpa %s507, 1
    %509 = vsyncpa [#allocation7], 1
    %s510 = scalar_lea.sflag [#allocation7], 1
    %511 = vsyncpa %s510, 1

</llo_original>
